<compile_context>
chip_gen: v7x
topology: tpu7x:2x2x1
jax: 0.10.0
libtpu: 0.0.40
codegen_flags: <defaults>
</compile_context>

<pallas_src>
import functools
import math

import jax
import jax.numpy as jnp
from jax.experimental import pallas as pl
from jax.experimental.pallas import tpu as pltpu

# Working sets below are a few MiB; 48 MiB stays under v7x's 64 MiB physical
# VMEM (v5e/v6e have 128 MiB) while leaving Mosaic scheduling headroom.
_VMEM_LIMIT_BYTES = 48 * 1024 * 1024
_MASK_FILL = -1000000000.0  # matches masked_fill(mask == 0, -1e9)


def _pick_tile(dim, preferred, align):
    """Largest multiple of `align` <= `preferred` that divides `dim`.
    Falls back to the full dimension (always a legal block shape).
    # TODO(synk): ragged dims with no aligned divisor fall back to the full
    # dimension (legal but untiled); a pad-and-mask path is needed for that."""
    if dim <= preferred:
        return dim
    t = (preferred // align) * align
    while t >= align:
        if dim % t == 0:
            return t
        t -= align
    return dim


def _kv_tile_preference():
    """v6e/v7x MXUs are 256 deep -> contract 256 keys per p@V matmul;
    v5e's MXU is 128 deep, so a larger tk buys nothing there."""
    try:
        kind = jax.devices()[0].device_kind.lower()
    except Exception:
        return 256
    return 128 if "v5" in kind else 256


# ---------------------------------------------------------------------------
# Plain tiled linear:  y = x @ w_t + b   (x bf16, w_t pre-transposed bf16)
# ---------------------------------------------------------------------------
def _linear_kernel(x_ref, w_ref, b_ref, o_ref, acc_ref):
    @pl.when(pl.program_id(2) == 0)
    def _init():
        acc_ref[...] = jnp.zeros_like(acc_ref)

    acc_ref[...] += jnp.dot(x_ref[...], w_ref[...],
                            preferred_element_type=jnp.float32)

    @pl.when(pl.program_id(2) == pl.num_programs(2) - 1)
    def _finalize():
        o_ref[...] = (acc_ref[...] + b_ref[...]).astype(o_ref.dtype)


def linear(x, w_t, b, out_dtype):
    """x: (M, K) bf16;  w_t: (K, N) bf16 pre-transposed;  b: (1, N) f32."""
    M, K = x.shape
    N = w_t.shape[1]
    tm = _pick_tile(M, 256, 16)
    tn = _pick_tile(N, 512, 128)
    tk = _pick_tile(K, 512, 128)
    return pl.pallas_call(
        _linear_kernel,
        out_shape=jax.ShapeDtypeStruct((M, N), out_dtype),
        grid=(M // tm, N // tn, K // tk),
        in_specs=[
            pl.BlockSpec((tm, tk), lambda i, j, k: (i, k)),
            pl.BlockSpec((tk, tn), lambda i, j, k: (k, j)),
            pl.BlockSpec((1, tn), lambda i, j, k: (0, j)),
        ],
        out_specs=pl.BlockSpec((tm, tn), lambda i, j, k: (i, j)),
        scratch_shapes=[pltpu.VMEM((tm, tn), jnp.float32)],
        compiler_params=pltpu.CompilerParams(
            dimension_semantics=("parallel", "parallel", "arbitrary"),
            vmem_limit_bytes=_VMEM_LIMIT_BYTES),
    )(x, w_t, b)


# ---------------------------------------------------------------------------
# Head-major projection: y = x @ w_t + b, written as n_out tensors of shape
# (h, M, d_k).  Used for fused QKV (n_out=3), fused KV (n_out=2) and Q (n_out=1).
# ---------------------------------------------------------------------------
def _proj_heads_kernel(x_ref, w_ref, b_ref, *rest, h, d_k, n_out):
    out_refs = rest[:n_out]
    acc_ref = rest[n_out]

    @pl.when(pl.program_id(1) == 0)
    def _init():
        acc_ref[...] = jnp.zeros_like(acc_ref)

    acc_ref[...] += jnp.dot(x_ref[...], w_ref[...],
                            preferred_element_type=jnp.float32)

    @pl.when(pl.program_id(1) == pl.num_programs(1) - 1)
    def _finalize():
        # Per-head column extracts once per M tile; each slab is written
        # directly so only one (tm, d_k) f32 value is live at a time.
        for t in range(n_out):
            o = out_refs[t]
            for head in range(h):
                c0 = (t * h + head) * d_k
                o[head] = (acc_ref[:, c0:c0 + d_k]
                           + b_ref[:, c0:c0 + d_k]).astype(o.dtype)


def heads_projection(x, w_t, b, h, d_k, n_out):
    """x: (M, D) bf16;  w_t: (D, n_out*D) bf16;  b: (1, n_out*D) f32.
    Returns a tuple of n_out arrays, each (h, M, d_k) bf16 (head-major)."""
    M, K = x.shape
    N = w_t.shape[1]
    tm = _pick_tile(M, 256, 16)
    tk = _pick_tile(K, 512, 128)
    out_sd = jax.ShapeDtypeStruct((h, M, d_k), jnp.bfloat16)
    out_spec = pl.BlockSpec((h, tm, d_k), lambda i, k: (0, i, 0))
    kernel = functools.partial(_proj_heads_kernel, h=h, d_k=d_k, n_out=n_out)
    return pl.pallas_call(
        kernel,
        out_shape=tuple([out_sd] * n_out),
        grid=(M // tm, K // tk),
        in_specs=[
            pl.BlockSpec((tm, tk), lambda i, k: (i, k)),
            pl.BlockSpec((tk, N), lambda i, k: (k, 0)),
            pl.BlockSpec((1, N), lambda i, k: (0, 0)),
        ],
        out_specs=tuple([out_spec] * n_out),
        scratch_shapes=[pltpu.VMEM((tm, N), jnp.float32)],
        compiler_params=pltpu.CompilerParams(
            dimension_semantics=("parallel", "arbitrary"),
            vmem_limit_bytes=_VMEM_LIMIT_BYTES),
    )(x, w_t, b)


# ---------------------------------------------------------------------------
# Flash-style multi-head attention on head-major (h, B, S, d_k) tensors.
# Output is lane-dense (B, Sq, D) with heads interleaved along D.
# ---------------------------------------------------------------------------
def _attn_kernel(*refs, h, d_k, tq, tk, causal, masked):
    if masked:
        q_ref, k_ref, v_ref, m_ref, o_ref, m_sc, l_sc, acc_sc = refs
    else:
        q_ref, k_ref, v_ref, o_ref, m_sc, l_sc, acc_sc = refs

    qi = pl.program_id(1)
    ki = pl.program_id(2)

    @pl.when(ki == 0)
    def _init():
        m_sc[...] = jnp.full_like(m_sc, -jnp.inf)
        l_sc[...] = jnp.zeros_like(l_sc)
        acc_sc[...] = jnp.zeros_like(acc_sc)

    def _update():
        q = q_ref[...]                      # (h, tq, d_k) bf16; 1/sqrt(d_k) folded in
        k = k_ref[...]                      # (h, tk, d_k) bf16
        v = v_ref[...]                      # (h, tk, d_k) bf16

        # One batched MXU matmul over all heads: (h, tq, tk) f32 scores.
        s = jax.lax.dot_general(q, k, (((2,), (2,)), ((0,), (0,))),
                                preferred_element_type=jnp.float32)
        if causal:
            # In-kernel causal mask: zero HBM mask traffic.
            q_idx = qi * tq + jax.lax.broadcasted_iota(jnp.int32, (tq, tk), 0)
            k_idx = ki * tk + jax.lax.broadcasted_iota(jnp.int32, (tq, tk), 1)
            s = jnp.where((k_idx <= q_idx)[None], s, _MASK_FILL)
        elif masked:
            keep = m_ref[...] != 0          # (tqm, tk); tqm is tq or 1
            s = jnp.where(keep[None], s, _MASK_FILL)

        m_prev = m_sc[...]                                        # (h, tq, 1)
        m_new = jnp.maximum(m_prev, jnp.max(s, axis=-1, keepdims=True))
        alpha = jnp.exp(m_prev - m_new)
        p = jnp.exp(s - m_new)                                    # (h, tq, tk)
        l_sc[...] = alpha * l_sc[...] + jnp.sum(p, axis=-1, keepdims=True)
        acc_sc[...] = alpha * acc_sc[...] + jax.lax.dot_general(
            p.astype(jnp.bfloat16), v, (((2,), (1,)), ((0,), (0,))),
            preferred_element_type=jnp.float32)                   # (h, tq, d_k)
        m_sc[...] = m_new

    if causal:
        # Skip KV tiles that are entirely above the diagonal (fully masked).
        @pl.when(ki * tk <= qi * tq + (tq - 1))
        def _():
            _update()
    else:
        _update()

    @pl.when(ki == pl.num_programs(2) - 1)
    def _finalize():
        # Store each head's normalized slab directly into the lane-dense
        # (tq, D) output; no concatenate, only one head slab live at a time.
        for head in range(h):
            inv = pl.reciprocal(l_sc[head], approx=True)          # (tq, 1)
            o_ref[:, head * d_k:(head + 1) * d_k] = (
                acc_sc[head] * inv).astype(o_ref.dtype)


def flash_attention(q, k, v, h, d_k, mask=None, causal=False):
    """q, k, v: (h, B, S, d_k) bf16 head-major.
    mask: None, or array broadcastable to (B, Sq, Sk).  causal=True computes
    the causal mask in-kernel (mask argument is then ignored)."""
    _, B, Sq, _ = q.shape
    Sk = k.shape[2]
    D = h * d_k
    tq = _pick_tile(Sq, 128, 16)
    tk = _pick_tile(Sk, _kv_tile_preference(), 128)
    grid = (B, Sq // tq, Sk // tk)

    q_spec = pl.BlockSpec((h, None, tq, d_k), lambda b, qi, ki: (0, b, qi, 0))
    kv_spec = pl.BlockSpec((h, None, tk, d_k), lambda b, qi, ki: (0, b, ki, 0))
    o_spec = pl.BlockSpec((None, tq, D), lambda b, qi, ki: (b, qi, 0))
    scratch = [pltpu.VMEM((h, tq, 1), jnp.float32),      # running max
               pltpu.VMEM((h, tq, 1), jnp.float32),      # running denominator
               pltpu.VMEM((h, tq, d_k), jnp.float32)]    # running numerator
    cparams = pltpu.CompilerParams(
        dimension_semantics=("parallel", "parallel", "arbitrary"),
        vmem_limit_bytes=_VMEM_LIMIT_BYTES)
    out_shape = jax.ShapeDtypeStruct((B, Sq, D), jnp.bfloat16)

    if causal:
        assert Sq == Sk, "causal attention expects Sq == Sk"
        kernel = functools.partial(_attn_kernel, h=h, d_k=d_k, tq=tq, tk=tk,
                                   causal=True, masked=False)
        return pl.pallas_call(kernel, out_shape=out_shape, grid=grid,
                              in_specs=[q_spec, kv_spec, kv_spec],
                              out_specs=o_spec, scratch_shapes=scratch,
                              compiler_params=cparams)(q, k, v)

    if mask is None:
        kernel = functools.partial(_attn_kernel, h=h, d_k=d_k, tq=tq, tk=tk,
                                   causal=False, masked=False)
        return pl.pallas_call(kernel, out_shape=out_shape, grid=grid,
                              in_specs=[q_spec, kv_spec, kv_spec],
                              out_specs=o_spec, scratch_shapes=scratch,
                              compiler_params=cparams)(q, k, v)

    # Arbitrary mask: int8, broadcast batch / query dims kept un-materialized.
    mask = jnp.asarray(mask)
    if mask.ndim == 2:
        mask = mask[None]
    Bm, Sqm, Skm = mask.shape
    assert Skm == Sk and Bm in (1, B) and Sqm in (1, Sq)
    mask_i8 = (mask != 0).astype(jnp.int8)
    tqm = tq if Sqm == Sq else 1
    m_spec = pl.BlockSpec(
        (None, tqm, tk),
        lambda b, qi, ki: (b if Bm > 1 else 0, qi if Sqm > 1 else 0, ki))
    kernel = functools.partial(_attn_kernel, h=h, d_k=d_k, tq=tq, tk=tk,
                               causal=False, masked=True)
    return pl.pallas_call(kernel, out_shape=out_shape, grid=grid,
                          in_specs=[q_spec, kv_spec, kv_spec, m_spec],
                          out_specs=o_spec, scratch_shapes=scratch,
                          compiler_params=cparams)(q, k, v, mask_i8)


# ---------------------------------------------------------------------------
# Parameter prep (once, outside the forward) and full forward pass.
# ---------------------------------------------------------------------------
def prepare_params(torch_params, h):
    """torch_params = [(Wq,bq),(Wk,bk),(Wv,bv),(Wo,bo)] in PyTorch (out,in) layout.
    Pre-transpose, pre-cast to bf16 and fold 1/sqrt(d_k) into the Q projection."""
    (wq, bq), (wk, bk), (wv, bv), (wo, bo) = torch_params
    d_model = wq.shape[0]
    assert d_model % h == 0
    d_k = d_model // h
    scale = 1.0 / math.sqrt(d_k)
    wq_s, bq_s = wq * scale, bq * scale

    def prep(w, b):
        return w.T.astype(jnp.bfloat16), b.reshape(1, -1).astype(jnp.float32)

    p = {"h": h, "d_model": d_model, "d_k": d_k}
    p["w_qkv"], p["b_qkv"] = prep(jnp.concatenate([wq_s, wk, wv], axis=0),
                                  jnp.concatenate([bq_s, bk, bv], axis=0))
    p["w_kv"], p["b_kv"] = prep(jnp.concatenate([wk, wv], axis=0),
                                jnp.concatenate([bk, bv], axis=0))
    p["w_q"], p["b_q"] = prep(wq_s, bq_s)
    p["w_k"], p["b_k"] = prep(wk, bk)
    p["w_v"], p["b_v"] = prep(wv, bv)
    p["w_out"], p["b_out"] = prep(wo, bo)
    return p


def multi_headed_attention(p, query, key, value, mask=None, causal=False):
    B, Sq, D = query.shape
    Sk = key.shape[1]
    h, d_k = p["h"], p["d_k"]

    # Cast activations to bf16 once in the wrapper (halves projection DMA).
    q_in = query.astype(jnp.bfloat16).reshape(B * Sq, D)

    if (query is key) and (key is value):
        q4, k4, v4 = heads_projection(q_in, p["w_qkv"], p["b_qkv"], h, d_k, 3)
    else:
        (q4,) = heads_projection(q_in, p["w_q"], p["b_q"], h, d_k, 1)
        kv_in = key.astype(jnp.bfloat16).reshape(B * Sk, D)
        if key is value:
            k4, v4 = heads_projection(kv_in, p["w_kv"], p["b_kv"], h, d_k, 2)
        else:
            v_in = value.astype(jnp.bfloat16).reshape(B * Sk, D)
            (k4,) = heads_projection(kv_in, p["w_k"], p["b_k"], h, d_k, 1)
            (v4,) = heads_projection(v_in, p["w_v"], p["b_v"], h, d_k, 1)

    # Head-major layout (free leading-axis reshape); no HBM transposes.
    q4 = q4.reshape(h, B, Sq, d_k)
    k4 = k4.reshape(h, B, Sk, d_k)
    v4 = v4.reshape(h, B, Sk, d_k)

    attn = flash_attention(q4, k4, v4, h, d_k, mask=mask, causal=causal)
    out = linear(attn.reshape(B * Sq, D), p["w_out"], p["b_out"], jnp.float32)
    return out.reshape(B, Sq, D)


# ---------------------------------------------------------------------------
# Pure-JAX f32 reference (semantics of the PyTorch module, eval mode).
# ---------------------------------------------------------------------------
def reference(torch_params, query, key, value, h, mask=None):
    B, Sq, D = query.shape
    d_k = D // h

    def lin(x, W, b):
        return x @ W.T + b

    def proj(x, W, b):
        S = x.shape[1]
        return lin(x, W, b).reshape(B, S, h, d_k).transpose(0, 2, 1, 3)

    q = proj(query, *torch_params[0])
    k = proj(key, *torch_params[1])
    v = proj(value, *torch_params[2])
    scores = (q @ k.transpose(0, 1, 3, 2)) / math.sqrt(d_k)
    if mask is not None:
        scores = jnp.where(mask[:, None] == 0, _MASK_FILL, scores)
    pa = jax.nn.softmax(scores, axis=-1)
    x = (pa @ v).transpose(0, 2, 1, 3).reshape(B, Sq, D)
    Wo, bo = torch_params[3]
    return lin(x, Wo, bo)


if __name__ == "__main__":
    B, S, D, H = 2, 8, 32, 4  # batch, seq, d_model, heads

    root = jax.random.PRNGKey(0)
    rngs = jax.random.split(root, 12)

    def init_linear(kw, kb, fan_in, fan_out):
        bound = 1.0 / math.sqrt(fan_in)
        W = jax.random.uniform(kw, (fan_out, fan_in), jnp.float32, -bound, bound)
        b = jax.random.uniform(kb, (fan_out,), jnp.float32, -bound, bound)
        return W, b

    torch_params = [init_linear(rngs[2 * i], rngs[2 * i + 1], D, D) for i in range(4)]
    prep = prepare_params(torch_params, H)

    # bf16 MXU inputs (f32 accumulation) -> bf16-appropriate tolerance.
    TOL = dict(atol=5e-2, rtol=5e-2)

    x = jax.random.normal(rngs[8], (B, S, D), jnp.float32)
    causal_mask = jnp.broadcast_to(jnp.tril(jnp.ones((S, S), jnp.int32)), (B, S, S))

    # Case 1: self-attention, in-kernel causal mask (fused QKV + tile skip).
    out1 = jax.block_until_ready(multi_headed_attention(prep, x, x, x, causal=True))
    ref1 = reference(torch_params, x, x, x, H, mask=causal_mask)
    assert out1.shape == (B, S, D)
    assert jnp.allclose(out1, ref1, **TOL), (
        f"causal self-attn mismatch, max abs err {jnp.max(jnp.abs(out1 - ref1))}")

    # Case 2: self-attention with an explicit (B, S, S) mask (int8 mask path).
    out2 = jax.block_until_ready(
        multi_headed_attention(prep, x, x, x, mask=causal_mask))
    assert jnp.allclose(out2, ref1, **TOL), (
        f"explicit-mask self-attn mismatch, max abs err {jnp.max(jnp.abs(out2 - ref1))}")

    # Case 3: cross-attention with a (B, 1, Sk) padding mask (fused KV path).
    q_src = jax.random.normal(rngs[9], (B, S, D), jnp.float32)
    kv_src = jax.random.normal(rngs[10], (B, S, D), jnp.float32)
    pad_mask = jnp.ones((B, 1, S), jnp.int32).at[1, 0, S - 2:].set(0)
    out3 = jax.block_until_ready(
        multi_headed_attention(prep, q_src, kv_src, kv_src, mask=pad_mask))
    ref3 = reference(torch_params, q_src, kv_src, kv_src, H, mask=pad_mask)
    assert jnp.allclose(out3, ref3, **TOL), (
        f"padded cross-attn mismatch, max abs err {jnp.max(jnp.abs(out3 - ref3))}")

    # Case 4: cross-attention, no mask.
    out4 = jax.block_until_ready(
        multi_headed_attention(prep, q_src, kv_src, kv_src))
    ref4 = reference(torch_params, q_src, kv_src, kv_src, H, mask=None)
    assert jnp.allclose(out4, ref4, **TOL), (
        f"cross-attn mismatch, max abs err {jnp.max(jnp.abs(out4 - ref4))}")

    print("KERNEL_OK")
</pallas_src>

<mosaic_0001>
module attributes {stable_mosaic.version = 11 : i64} {
  func.func @_proj_heads_kernel(%arg0: i32, %arg1: i32, %arg2: memref<16x32xbf16, #tpu.memory_space<vmem>>, %arg3: memref<32x96xbf16, #tpu.memory_space<vmem>>, %arg4: memref<1x96xf32, #tpu.memory_space<vmem>>, %arg5: memref<4x16x8xbf16, #tpu.memory_space<vmem>>, %arg6: memref<4x16x8xbf16, #tpu.memory_space<vmem>>, %arg7: memref<4x16x8xbf16, #tpu.memory_space<vmem>>, %arg8: memref<16x96xf32, #tpu.memory_space<vmem>>) attributes {dimension_semantics = [#tpu.dimension_semantics<parallel>, #tpu.dimension_semantics<arbitrary>], iteration_bounds = array<i64: 1, 1>, scalar_prefetch = 0 : i64, scratch_operands = 1 : i64, tpu.core_type = #tpu.core_type<tc>, window_params = [{transform_indices = @transform_0, window_bounds = array<i64: 16, 32>}, {transform_indices = @transform_1, window_bounds = array<i64: 32, 96>}, {pipeline_mode = #tpu.pipeline_mode<synchronous>, transform_indices = @transform_2, window_bounds = array<i64: 1, 96>}, {transform_indices = @transform_3, window_bounds = array<i64: 4, 16, 8>}, {transform_indices = @transform_4, window_bounds = array<i64: 4, 16, 8>}, {transform_indices = @transform_5, window_bounds = array<i64: 4, 16, 8>}]} {
    %c0_i32 = arith.constant 0 : i32
    %0 = arith.cmpi eq, %arg1, %c0_i32 : i32
    %1 = arith.extui %0 : i1 to i32
    %c0_i32_0 = arith.constant 0 : i32
    %2 = arith.cmpi ne, %1, %c0_i32_0 : i32
    scf.if %2 {
      %cst_10 = arith.constant 0.000000e+00 : f32
      %12 = vector.broadcast %cst_10 : f32 to vector<16x96xf32>
      %c0_11 = arith.constant 0 : index
      %c0_12 = arith.constant 0 : index
      %13 = vector.load %arg8[%c0_11, %c0_12] : memref<16x96xf32, #tpu.memory_space<vmem>>, vector<16x96xf32>
      tpu.vector_store %arg8[%c0_11, %c0_12], %12 {strides = array<i32>} : memref<16x96xf32, #tpu.memory_space<vmem>>, vector<16x96xf32>,
    } else {
    }
    %c0 = arith.constant 0 : index
    %c0_1 = arith.constant 0 : index
    %3 = vector.load %arg8[%c0, %c0_1] : memref<16x96xf32, #tpu.memory_space<vmem>>, vector<16x96xf32>
    %c0_2 = arith.constant 0 : index
    %c0_3 = arith.constant 0 : index
    %4 = vector.load %arg2[%c0_2, %c0_3] : memref<16x32xbf16, #tpu.memory_space<vmem>>, vector<16x32xbf16>
    %c0_4 = arith.constant 0 : index
    %c0_5 = arith.constant 0 : index
    %5 = vector.load %arg3[%c0_4, %c0_5] : memref<32x96xbf16, #tpu.memory_space<vmem>>, vector<32x96xbf16>
    %cst = arith.constant dense<0.000000e+00> : vector<16x96xf32>
    %6 = tpu.matmul %4, %5, %cst {dimension_numbers = #tpu.dot_dimension_numbers<[1], [0], [0], [1], [0, 0, 1, 1], [], []>} : vector<16x32xbf16>, vector<32x96xbf16>, vector<16x96xf32> -> vector<16x96xf32>
    %7 = arith.addf %3, %6 : vector<16x96xf32>
    %c0_6 = arith.constant 0 : index
    %c0_7 = arith.constant 0 : index
    %8 = vector.load %arg8[%c0_6, %c0_7] : memref<16x96xf32, #tpu.memory_space<vmem>>, vector<16x96xf32>
    tpu.vector_store %arg8[%c0_6, %c0_7], %7 {strides = array<i32>} : memref<16x96xf32, #tpu.memory_space<vmem>>, vector<16x96xf32>,
    %c0_i32_8 = arith.constant 0 : i32
    %9 = arith.cmpi eq, %arg1, %c0_i32_8 : i32
    %10 = arith.extui %9 : i1 to i32
    %c0_i32_9 = arith.constant 0 : i32
    %11 = arith.cmpi ne, %10, %c0_i32_9 : i32
    scf.if %11 {
      %c0_10 = arith.constant 0 : index
      %c0_11 = arith.constant 0 : index
      %12 = vector.load %arg8[%c0_10, %c0_11] : memref<16x96xf32, #tpu.memory_space<vmem>>, vector<16x8xf32>
      %c0_12 = arith.constant 0 : index
      %c0_13 = arith.constant 0 : index
      %13 = vector.load %arg4[%c0_12, %c0_13] : memref<1x96xf32, #tpu.memory_space<vmem>>, vector<1x8xf32>
      %14 = vector.broadcast %13 : vector<1x8xf32> to vector<16x8xf32>
      %15 = arith.addf %12, %14 : vector<16x8xf32>
      %16 = arith.truncf %15 : vector<16x8xf32> to vector<16x8xbf16>
      %c0_14 = arith.constant 0 : index
      %c0_15 = arith.constant 0 : index
      %c0_16 = arith.constant 0 : index
      %17 = vector.load %arg5[%c0_14, %c0_15, %c0_16] : memref<4x16x8xbf16, #tpu.memory_space<vmem>>, vector<1x16x8xbf16>
      %18 = vector.shape_cast %17 : vector<1x16x8xbf16> to vector<16x8xbf16>
      %19 = vector.shape_cast %16 : vector<16x8xbf16> to vector<1x16x8xbf16>
      tpu.vector_store %arg5[%c0_14, %c0_15, %c0_16], %19 {strides = array<i32>} : memref<4x16x8xbf16, #tpu.memory_space<vmem>>, vector<1x16x8xbf16>,
      %c0_17 = arith.constant 0 : index
      %c8 = arith.constant 8 : index
      %20 = vector.load %arg8[%c0_17, %c8] : memref<16x96xf32, #tpu.memory_space<vmem>>, vector<16x8xf32>
      %c0_18 = arith.constant 0 : index
      %c8_19 = arith.constant 8 : index
      %21 = vector.load %arg4[%c0_18, %c8_19] : memref<1x96xf32, #tpu.memory_space<vmem>>, vector<1x8xf32>
      %22 = vector.broadcast %21 : vector<1x8xf32> to vector<16x8xf32>
      %23 = arith.addf %20, %22 : vector<16x8xf32>
      %24 = arith.truncf %23 : vector<16x8xf32> to vector<16x8xbf16>
      %c1 = arith.constant 1 : index
      %c0_20 = arith.constant 0 : index
      %c0_21 = arith.constant 0 : index
      %25 = vector.load %arg5[%c1, %c0_20, %c0_21] : memref<4x16x8xbf16, #tpu.memory_space<vmem>>, vector<1x16x8xbf16>
      %26 = vector.shape_cast %25 : vector<1x16x8xbf16> to vector<16x8xbf16>
      %27 = vector.shape_cast %24 : vector<16x8xbf16> to vector<1x16x8xbf16>
      tpu.vector_store %arg5[%c1, %c0_20, %c0_21], %27 {strides = array<i32>} : memref<4x16x8xbf16, #tpu.memory_space<vmem>>, vector<1x16x8xbf16>,
      %c0_22 = arith.constant 0 : index
      %c16 = arith.constant 16 : index
      %28 = vector.load %arg8[%c0_22, %c16] : memref<16x96xf32, #tpu.memory_space<vmem>>, vector<16x8xf32>
      %c0_23 = arith.constant 0 : index
      %c16_24 = arith.constant 16 : index
      %29 = vector.load %arg4[%c0_23, %c16_24] : memref<1x96xf32, #tpu.memory_space<vmem>>, vector<1x8xf32>
      %30 = vector.broadcast %29 : vector<1x8xf32> to vector<16x8xf32>
      %31 = arith.addf %28, %30 : vector<16x8xf32>
      %32 = arith.truncf %31 : vector<16x8xf32> to vector<16x8xbf16>
      %c2 = arith.constant 2 : index
      %c0_25 = arith.constant 0 : index
      %c0_26 = arith.constant 0 : index
      %33 = vector.load %arg5[%c2, %c0_25, %c0_26] : memref<4x16x8xbf16, #tpu.memory_space<vmem>>, vector<1x16x8xbf16>
      %34 = vector.shape_cast %33 : vector<1x16x8xbf16> to vector<16x8xbf16>
      %35 = vector.shape_cast %32 : vector<16x8xbf16> to vector<1x16x8xbf16>
      tpu.vector_store %arg5[%c2, %c0_25, %c0_26], %35 {strides = array<i32>} : memref<4x16x8xbf16, #tpu.memory_space<vmem>>, vector<1x16x8xbf16>,
      %c0_27 = arith.constant 0 : index
      %c24 = arith.constant 24 : index
      %36 = vector.load %arg8[%c0_27, %c24] : memref<16x96xf32, #tpu.memory_space<vmem>>, vector<16x8xf32>
      %c0_28 = arith.constant 0 : index
      %c24_29 = arith.constant 24 : index
      %37 = vector.load %arg4[%c0_28, %c24_29] : memref<1x96xf32, #tpu.memory_space<vmem>>, vector<1x8xf32>
      %38 = vector.broadcast %37 : vector<1x8xf32> to vector<16x8xf32>
      %39 = arith.addf %36, %38 : vector<16x8xf32>
      %40 = arith.truncf %39 : vector<16x8xf32> to vector<16x8xbf16>
      %c3 = arith.constant 3 : index
      %c0_30 = arith.constant 0 : index
      %c0_31 = arith.constant 0 : index
      %41 = vector.load %arg5[%c3, %c0_30, %c0_31] : memref<4x16x8xbf16, #tpu.memory_space<vmem>>, vector<1x16x8xbf16>
      %42 = vector.shape_cast %41 : vector<1x16x8xbf16> to vector<16x8xbf16>
      %43 = vector.shape_cast %40 : vector<16x8xbf16> to vector<1x16x8xbf16>
      tpu.vector_store %arg5[%c3, %c0_30, %c0_31], %43 {strides = array<i32>} : memref<4x16x8xbf16, #tpu.memory_space<vmem>>, vector<1x16x8xbf16>,
      %c0_32 = arith.constant 0 : index
      %c32 = arith.constant 32 : index
      %44 = vector.load %arg8[%c0_32, %c32] : memref<16x96xf32, #tpu.memory_space<vmem>>, vector<16x8xf32>
      %c0_33 = arith.constant 0 : index
      %c32_34 = arith.constant 32 : index
      %45 = vector.load %arg4[%c0_33, %c32_34] : memref<1x96xf32, #tpu.memory_space<vmem>>, vector<1x8xf32>
      %46 = vector.broadcast %45 : vector<1x8xf32> to vector<16x8xf32>
      %47 = arith.addf %44, %46 : vector<16x8xf32>
      %48 = arith.truncf %47 : vector<16x8xf32> to vector<16x8xbf16>
      %c0_35 = arith.constant 0 : index
      %c0_36 = arith.constant 0 : index
      %c0_37 = arith.constant 0 : index
      %49 = vector.load %arg6[%c0_35, %c0_36, %c0_37] : memref<4x16x8xbf16, #tpu.memory_space<vmem>>, vector<1x16x8xbf16>
      %50 = vector.shape_cast %49 : vector<1x16x8xbf16> to vector<16x8xbf16>
      %51 = vector.shape_cast %48 : vector<16x8xbf16> to vector<1x16x8xbf16>
      tpu.vector_store %arg6[%c0_35, %c0_36, %c0_37], %51 {strides = array<i32>} : memref<4x16x8xbf16, #tpu.memory_space<vmem>>, vector<1x16x8xbf16>,
      %c0_38 = arith.constant 0 : index
      %c40 = arith.constant 40 : index
      %52 = vector.load %arg8[%c0_38, %c40] : memref<16x96xf32, #tpu.memory_space<vmem>>, vector<16x8xf32>
      %c0_39 = arith.constant 0 : index
      %c40_40 = arith.constant 40 : index
      %53 = vector.load %arg4[%c0_39, %c40_40] : memref<1x96xf32, #tpu.memory_space<vmem>>, vector<1x8xf32>
      %54 = vector.broadcast %53 : vector<1x8xf32> to vector<16x8xf32>
      %55 = arith.addf %52, %54 : vector<16x8xf32>
      %56 = arith.truncf %55 : vector<16x8xf32> to vector<16x8xbf16>
      %c1_41 = arith.constant 1 : index
      %c0_42 = arith.constant 0 : index
      %c0_43 = arith.constant 0 : index
      %57 = vector.load %arg6[%c1_41, %c0_42, %c0_43] : memref<4x16x8xbf16, #tpu.memory_space<vmem>>, vector<1x16x8xbf16>
      %58 = vector.shape_cast %57 : vector<1x16x8xbf16> to vector<16x8xbf16>
      %59 = vector.shape_cast %56 : vector<16x8xbf16> to vector<1x16x8xbf16>
      tpu.vector_store %arg6[%c1_41, %c0_42, %c0_43], %59 {strides = array<i32>} : memref<4x16x8xbf16, #tpu.memory_space<vmem>>, vector<1x16x8xbf16>,
      %c0_44 = arith.constant 0 : index
      %c48 = arith.constant 48 : index
      %60 = vector.load %arg8[%c0_44, %c48] : memref<16x96xf32, #tpu.memory_space<vmem>>, vector<16x8xf32>
      %c0_45 = arith.constant 0 : index
      %c48_46 = arith.constant 48 : index
      %61 = vector.load %arg4[%c0_45, %c48_46] : memref<1x96xf32, #tpu.memory_space<vmem>>, vector<1x8xf32>
      %62 = vector.broadcast %61 : vector<1x8xf32> to vector<16x8xf32>
      %63 = arith.addf %60, %62 : vector<16x8xf32>
      %64 = arith.truncf %63 : vector<16x8xf32> to vector<16x8xbf16>
      %c2_47 = arith.constant 2 : index
      %c0_48 = arith.constant 0 : index
      %c0_49 = arith.constant 0 : index
      %65 = vector.load %arg6[%c2_47, %c0_48, %c0_49] : memref<4x16x8xbf16, #tpu.memory_space<vmem>>, vector<1x16x8xbf16>
      %66 = vector.shape_cast %65 : vector<1x16x8xbf16> to vector<16x8xbf16>
      %67 = vector.shape_cast %64 : vector<16x8xbf16> to vector<1x16x8xbf16>
      tpu.vector_store %arg6[%c2_47, %c0_48, %c0_49], %67 {strides = array<i32>} : memref<4x16x8xbf16, #tpu.memory_space<vmem>>, vector<1x16x8xbf16>,
      %c0_50 = arith.constant 0 : index
      %c56 = arith.constant 56 : index
      %68 = vector.load %arg8[%c0_50, %c56] : memref<16x96xf32, #tpu.memory_space<vmem>>, vector<16x8xf32>
      %c0_51 = arith.constant 0 : index
      %c56_52 = arith.constant 56 : index
      %69 = vector.load %arg4[%c0_51, %c56_52] : memref<1x96xf32, #tpu.memory_space<vmem>>, vector<1x8xf32>
      %70 = vector.broadcast %69 : vector<1x8xf32> to vector<16x8xf32>
      %71 = arith.addf %68, %70 : vector<16x8xf32>
      %72 = arith.truncf %71 : vector<16x8xf32> to vector<16x8xbf16>
      %c3_53 = arith.constant 3 : index
      %c0_54 = arith.constant 0 : index
      %c0_55 = arith.constant 0 : index
      %73 = vector.load %arg6[%c3_53, %c0_54, %c0_55] : memref<4x16x8xbf16, #tpu.memory_space<vmem>>, vector<1x16x8xbf16>
      %74 = vector.shape_cast %73 : vector<1x16x8xbf16> to vector<16x8xbf16>
      %75 = vector.shape_cast %72 : vector<16x8xbf16> to vector<1x16x8xbf16>
      tpu.vector_store %arg6[%c3_53, %c0_54, %c0_55], %75 {strides = array<i32>} : memref<4x16x8xbf16, #tpu.memory_space<vmem>>, vector<1x16x8xbf16>,
      %c0_56 = arith.constant 0 : index
      %c64 = arith.constant 64 : index
      %76 = vector.load %arg8[%c0_56, %c64] : memref<16x96xf32, #tpu.memory_space<vmem>>, vector<16x8xf32>
      %c0_57 = arith.constant 0 : index
      %c64_58 = arith.constant 64 : index
      %77 = vector.load %arg4[%c0_57, %c64_58] : memref<1x96xf32, #tpu.memory_space<vmem>>, vector<1x8xf32>
      %78 = vector.broadcast %77 : vector<1x8xf32> to vector<16x8xf32>
      %79 = arith.addf %76, %78 : vector<16x8xf32>
      %80 = arith.truncf %79 : vector<16x8xf32> to vector<16x8xbf16>
      %c0_59 = arith.constant 0 : index
      %c0_60 = arith.constant 0 : index
      %c0_61 = arith.constant 0 : index
      %81 = vector.load %arg7[%c0_59, %c0_60, %c0_61] : memref<4x16x8xbf16, #tpu.memory_space<vmem>>, vector<1x16x8xbf16>
      %82 = vector.shape_cast %81 : vector<1x16x8xbf16> to vector<16x8xbf16>
      %83 = vector.shape_cast %80 : vector<16x8xbf16> to vector<1x16x8xbf16>
      tpu.vector_store %arg7[%c0_59, %c0_60, %c0_61], %83 {strides = array<i32>} : memref<4x16x8xbf16, #tpu.memory_space<vmem>>, vector<1x16x8xbf16>,
      %c0_62 = arith.constant 0 : index
      %c72 = arith.constant 72 : index
      %84 = vector.load %arg8[%c0_62, %c72] : memref<16x96xf32, #tpu.memory_space<vmem>>, vector<16x8xf32>
      %c0_63 = arith.constant 0 : index
      %c72_64 = arith.constant 72 : index
      %85 = vector.load %arg4[%c0_63, %c72_64] : memref<1x96xf32, #tpu.memory_space<vmem>>, vector<1x8xf32>
      %86 = vector.broadcast %85 : vector<1x8xf32> to vector<16x8xf32>
      %87 = arith.addf %84, %86 : vector<16x8xf32>
      %88 = arith.truncf %87 : vector<16x8xf32> to vector<16x8xbf16>
      %c1_65 = arith.constant 1 : index
      %c0_66 = arith.constant 0 : index
      %c0_67 = arith.constant 0 : index
      %89 = vector.load %arg7[%c1_65, %c0_66, %c0_67] : memref<4x16x8xbf16, #tpu.memory_space<vmem>>, vector<1x16x8xbf16>
      %90 = vector.shape_cast %89 : vector<1x16x8xbf16> to vector<16x8xbf16>
      %91 = vector.shape_cast %88 : vector<16x8xbf16> to vector<1x16x8xbf16>
      tpu.vector_store %arg7[%c1_65, %c0_66, %c0_67], %91 {strides = array<i32>} : memref<4x16x8xbf16, #tpu.memory_space<vmem>>, vector<1x16x8xbf16>,
      %c0_68 = arith.constant 0 : index
      %c80 = arith.constant 80 : index
      %92 = vector.load %arg8[%c0_68, %c80] : memref<16x96xf32, #tpu.memory_space<vmem>>, vector<16x8xf32>
      %c0_69 = arith.constant 0 : index
      %c80_70 = arith.constant 80 : index
      %93 = vector.load %arg4[%c0_69, %c80_70] : memref<1x96xf32, #tpu.memory_space<vmem>>, vector<1x8xf32>
      %94 = vector.broadcast %93 : vector<1x8xf32> to vector<16x8xf32>
      %95 = arith.addf %92, %94 : vector<16x8xf32>
      %96 = arith.truncf %95 : vector<16x8xf32> to vector<16x8xbf16>
      %c2_71 = arith.constant 2 : index
      %c0_72 = arith.constant 0 : index
      %c0_73 = arith.constant 0 : index
      %97 = vector.load %arg7[%c2_71, %c0_72, %c0_73] : memref<4x16x8xbf16, #tpu.memory_space<vmem>>, vector<1x16x8xbf16>
      %98 = vector.shape_cast %97 : vector<1x16x8xbf16> to vector<16x8xbf16>
      %99 = vector.shape_cast %96 : vector<16x8xbf16> to vector<1x16x8xbf16>
      tpu.vector_store %arg7[%c2_71, %c0_72, %c0_73], %99 {strides = array<i32>} : memref<4x16x8xbf16, #tpu.memory_space<vmem>>, vector<1x16x8xbf16>,
      %c0_74 = arith.constant 0 : index
      %c88 = arith.constant 88 : index
      %100 = vector.load %arg8[%c0_74, %c88] : memref<16x96xf32, #tpu.memory_space<vmem>>, vector<16x8xf32>
      %c0_75 = arith.constant 0 : index
      %c88_76 = arith.constant 88 : index
      %101 = vector.load %arg4[%c0_75, %c88_76] : memref<1x96xf32, #tpu.memory_space<vmem>>, vector<1x8xf32>
      %102 = vector.broadcast %101 : vector<1x8xf32> to vector<16x8xf32>
      %103 = arith.addf %100, %102 : vector<16x8xf32>
      %104 = arith.truncf %103 : vector<16x8xf32> to vector<16x8xbf16>
      %c3_77 = arith.constant 3 : index
      %c0_78 = arith.constant 0 : index
      %c0_79 = arith.constant 0 : index
      %105 = vector.load %arg7[%c3_77, %c0_78, %c0_79] : memref<4x16x8xbf16, #tpu.memory_space<vmem>>, vector<1x16x8xbf16>
      %106 = vector.shape_cast %105 : vector<1x16x8xbf16> to vector<16x8xbf16>
      %107 = vector.shape_cast %104 : vector<16x8xbf16> to vector<1x16x8xbf16>
      tpu.vector_store %arg7[%c3_77, %c0_78, %c0_79], %107 {strides = array<i32>} : memref<4x16x8xbf16, #tpu.memory_space<vmem>>, vector<1x16x8xbf16>,
    } else {
    }
    return
  }
  func.func @transform_0(%arg0: i32, %arg1: i32) -> (i32, i32) {
    %c0_i32 = arith.constant 0 : i32
    return %arg0, %arg1 : i32, i32
  }
  func.func @transform_1(%arg0: i32, %arg1: i32) -> (i32, i32) {
    %c0_i32 = arith.constant 0 : i32
    %c0_i32_0 = arith.constant 0 : i32
    return %arg1, %c0_i32 : i32, i32
  }
  func.func @transform_2(%arg0: i32, %arg1: i32) -> (i32, i32) {
    %c0_i32 = arith.constant 0 : i32
    %c0_i32_0 = arith.constant 0 : i32
    %c0_i32_1 = arith.constant 0 : i32
    return %c0_i32, %c0_i32_0 : i32, i32
  }
  func.func @transform_3(%arg0: i32, %arg1: i32) -> (i32, i32, i32) {
    %c0_i32 = arith.constant 0 : i32
    %c0_i32_0 = arith.constant 0 : i32
    %c0_i32_1 = arith.constant 0 : i32
    return %c0_i32, %arg0, %c0_i32_0 : i32, i32, i32
  }
  func.func @transform_4(%arg0: i32, %arg1: i32) -> (i32, i32, i32) {
    %c0_i32 = arith.constant 0 : i32
    %c0_i32_0 = arith.constant 0 : i32
    %c0_i32_1 = arith.constant 0 : i32
    return %c0_i32, %arg0, %c0_i32_0 : i32, i32, i32
  }
  func.func @transform_5(%arg0: i32, %arg1: i32) -> (i32, i32, i32) {
    %c0_i32 = arith.constant 0 : i32
    %c0_i32_0 = arith.constant 0 : i32
    %c0_i32_1 = arith.constant 0 : i32
    return %c0_i32, %arg0, %c0_i32_0 : i32, i32, i32
  }
}

</mosaic_0001>

<llo_original>
// kernel: tpu_custom_call.1
$region0: #{tpu_custom_call.1}
  #allocation0 [shape = 'u32[]', space=smem, size = 0x4, offset = 0x4, fixed_abs, tag = 'smem constant byte address 0x4 - core index']
  #allocation1 [shape = 'u32[144,128]{1,0:T(1,128)}', space=vmem, size = 0x12000, scoped, tag = 'internal scratch']
  #allocation2 [shape = 'f32[16,96]{1,0:T(8,128)}', space=vmem, size = 0x2000, scoped, tag = 'scratch operand']
  %s0 = inlined_call_operand.hbm [shape: bf16[16,32], index: 0, kind: input, shape index: {}]
  %s1 = inlined_call_operand.hbm [shape: bf16[32,96], index: 1, kind: input, shape index: {}]
  %s2 = inlined_call_operand.vmem [shape: f32[1,96], index: 2, kind: input, shape index: {}]
  %s3 = inlined_call_operand.vmem [shape: bf16[4,16,8], index: 3, kind: output, shape index: {0}]
  %s4 = inlined_call_operand.vmem [shape: bf16[4,16,8], index: 4, kind: output, shape index: {1}]
  %s5 = inlined_call_operand.vmem [shape: bf16[4,16,8], index: 5, kind: output, shape index: {2}]
  %6 = xla_tuple %s3, %s4, %s5
  %s7 = sld [smem:[#allocation0]]
  $region54: #{tpu_custom_call.1} parent=0
    _
  %s9 = ssub.s32 1, %s7
  %s10 = scalar_select 0, %s9, %s7
  $region1: #{tpu_custom_call.1} parent=0
    #allocation3 [shape = 'u8[4096]{0}', space=vmem, size = 0x1000, scoped, tag = 'input window, operand 0, single buffered']
    #allocation4 [shape = 's32[1]{0}', space=sflag, size = 0x4, scoped, tag = 'scoped memory for tpu_custom_call.1']
    #allocation5 [shape = 'u8[8192]{0}', space=vmem, size = 0x2000, scoped, tag = 'input window, operand 1, single buffered']
    #allocation6 [shape = 's32[1]{0}', space=sflag, size = 0x4, scoped, tag = 'scoped memory for tpu_custom_call.1']
    %11 = vsyncpa [#allocation4], 0
    %12 = vsyncpa [#allocation6], 0
    // Predicated region
    $region2: #{tpu_custom_call.1} parent=1 // pred_check
      _
    $region3: #{tpu_custom_call.1} parent=1 // pred_check_branch
      %14 = sbr.rel (0) target = $region5
    $region4: #{tpu_custom_call.1} parent=1 // pred_region
      %s16 = ssub.s32 128, 128
      %17 = vsyncadd [#allocation4], %s16
      %s18 = sshll.u32 [#allocation3], 4
      %s19 = int_to_ptr.vmem [resolvable:$true] %s18
      %24 = dma.hbm_to_vmem [thread:$0]  %s0, 128, %s19, [#allocation4], 64, 64, 4
    $region5: #{tpu_custom_call.1} parent=1 // pred_fallthru
      _
    // Predicated region
    $region6: #{tpu_custom_call.1} parent=1 // pred_check
      _
    $region7: #{tpu_custom_call.1} parent=1 // pred_check_branch
      %26 = sbr.rel (0) target = $region9
    $region8: #{tpu_custom_call.1} parent=1 // pred_region
      %s28 = ssub.s32 256, 256
      %29 = vsyncadd [#allocation6], %s28
      %s30 = sshll.u32 [#allocation5], 4
      %s31 = int_to_ptr.vmem [resolvable:$true] %s30
      %36 = dma.hbm_to_vmem [thread:$0]  %s1, 256, %s31, [#allocation6], 64, 64, 4
    $region9: #{tpu_custom_call.1} parent=1 // pred_fallthru
      _
    // Predicated region
    $region10: #{tpu_custom_call.1} parent=1 // pred_check
      _
    $region11: #{tpu_custom_call.1} parent=1 // pred_check_branch
      %38 = sbr.rel (0) target = $region13
    $region12: #{tpu_custom_call.1} parent=1 // pred_region
      _
    $region13: #{tpu_custom_call.1} parent=1 // pred_fallthru
      _
    // Predicated region
    $region14: #{tpu_custom_call.1} parent=1 // pred_check
      _
    $region15: #{tpu_custom_call.1} parent=1 // pred_check_branch
      %40 = sbr.rel (0) target = $region17
    $region16: #{tpu_custom_call.1} parent=1 // pred_region
      %41 = dma.done [#allocation4], 128
    $region17: #{tpu_custom_call.1} parent=1 // pred_fallthru
      _
    // Predicated region
    $region18: #{tpu_custom_call.1} parent=1 // pred_check
      _
    $region19: #{tpu_custom_call.1} parent=1 // pred_check_branch
      %43 = sbr.rel (0) target = $region21
    $region20: #{tpu_custom_call.1} parent=1 // pred_region
      %44 = dma.done [#allocation6], 256
    $region21: #{tpu_custom_call.1} parent=1 // pred_fallthru
      _
    %p46 = scmp.eq.s32.totalorder 0, 0
    // Predicated region
    $region22: #{tpu_custom_call.1} parent=1 // pred_check
      %p47 = pneg %p46
    $region23: #{tpu_custom_call.1} parent=1 // pred_check_branch
      %49 = sbr.rel (%p47) target = $region25
    $region24: #{tpu_custom_call.1} parent=1 // pred_region
      %vm50 = vcmask 785408
      %51 = vst.msk [vmem:[#allocation2] sm:$0xff] %vm50, 0.0
      %52 = vst.msk [vmem:[#allocation2 + $0x8] sm:$0xff] %vm50, 0.0
    $region25: #{tpu_custom_call.1} parent=1 // pred_fallthru
      _
    %v53 = vld [vmem:[#allocation2] sm:$0xff]
    %v54 = vld [vmem:[#allocation2 + $0x8] sm:$0xff]
    %v55 = vld [vmem:[#allocation3] sm:$0xf]
    %v56 = vld [vmem:[#allocation3 + $0x4] sm:$0xf]
    %v57 = vld [vmem:[#allocation5] sm:$0xf]
    %v58 = vld [vmem:[#allocation5 + $0x4] sm:$0xf]
    %v59 = vld [vmem:[#allocation5 + $0x8] sm:$0xf]
    %v60 = vld [vmem:[#allocation5 + $0xc] sm:$0xf]
    %v63 = vunpack.c.l.b16 %v55
    %v64 = vunpack.c.l.b16 %v56
    %v65 = vpack.c.b16 %v64, %v63
    %v70 = vunpack.c.l.b16 %v57
    %v71 = vunpack.c.l.b16 %v58
    %v72 = vunpack.c.l.b16 %v59
    %v73 = vunpack.c.l.b16 %v60
    %v74 = vpack.c.b16 %v71, %v70
    %v75 = vpack.c.b16 %v73, %v72
    %vm78 = vcmask 261120
    %v80 = vsel %vm78, %v65, 0
    %82 = vmatprep.subr.bf16.mxu0 0
    %83 = vmatpush1.bf16.msra.mxu0 %v74
    %84 = vmatprep.subr.bf16.mxu0 0
    %85 = vmatpush1.bf16.msra.mxu0 %v75
    %86 = vmatprep.subr.bf16.mxu0 0
    %87 = vmatpush1.bf16.msra.mxu0 0
    %88 = vmatprep.subr.bf16.mxu0 0
    %89 = vmatpush1.bf16.msra.mxu0 0
    %90 = vmatprep.subr.bf16.mxu0 0
    %91 = vmatpush1.bf16.msra.mxu0 0
    %92 = vmatprep.subr.bf16.mxu0 0
    %93 = vmatpush1.bf16.msra.mxu0 0
    %94 = vmatprep.subr.bf16.mxu0 0
    %95 = vmatpush1.bf16.msra.mxu0 0
    %96 = vmatprep.subr.bf16.mxu0 0
    %97 = vmatpush1.bf16.msra.mxu0 0
    %98 = vmatprep.subr.bf16.mxu0 0
    %99 = vmatpush1.bf16.msra.mxu0 0
    %100 = vmatprep.subr.bf16.mxu0 0
    %101 = vmatpush1.bf16.msra.mxu0 0
    %102 = vmatprep.subr.bf16.mxu0 0
    %103 = vmatpush1.bf16.msra.mxu0 0
    %104 = vmatprep.subr.bf16.mxu0 0
    %105 = vmatpush1.bf16.msra.mxu0 0
    %106 = vmatprep.subr.bf16.mxu0 0
    %107 = vmatpush1.bf16.msra.mxu0 0
    %108 = vmatprep.subr.bf16.mxu0 0
    %109 = vmatpush1.bf16.msra.mxu0 0
    %110 = vmatprep.subr.bf16.mxu0 0
    %111 = vmatpush1.bf16.msra.mxu0 0
    %112 = vmatprep.subr.bf16.mxu0 0
    %113 = vmatpush1.bf16.msra.mxu0 0
    %114 = vmatprep.mubr.bf16.mxu0 0
    %115 = vmatmul.mubr.bf16.gmra.mrb[0].mxu0 %v80
    %v116 = vpop.f32.mrb[0].mxu0
    %v117 = vadd.f32 0.0, %v116
    %v118 = vpop.f32.mrb[0].mxu0
    %v119 = vpop.f32.mrb[0].mxu0
    %v120 = vadd.f32 0.0, %v119
    %v121 = vpop.f32.mrb[0].mxu0
    %122 = vdwg.mxu0
    %v123 = vadd.f32 %v53, %v117
    %v124 = vadd.f32 %v54, %v120
    %vm125 = vcmask 785408
    %126 = vst.msk [vmem:[#allocation2] sm:$0xff] %vm125, %v123
    %127 = vst.msk [vmem:[#allocation2 + $0x8] sm:$0xff] %vm125, %v124
    // Predicated region
    $region26: #{tpu_custom_call.1} parent=1 // pred_check
      %p128 = pneg %p46
    $region27: #{tpu_custom_call.1} parent=1 // pred_check_branch
      %130 = sbr.rel (%p128) target = $region29
    $region28: #{tpu_custom_call.1} parent=1 // pred_region
      %v131 = vld [vmem:[#allocation2] sm:$0xff]
      %v132 = vld [vmem:[#allocation2 + $0x8] sm:$0xff]
      %v133 = vld [vmem:[%s2] sm:$0x1]
      %v135 = vlaneseq
      %v136 = vshrl.u32 %v135, 7
      %v137 = vsub.s32 0, %v136
      %v138 = vrot.slane %v133, %v137
      %v140 = vadd.f32 %v131, %v138
      %v141 = vadd.f32 %v132, %v138
      %v142 = vpack.c.bf16 %v141, %v140
      %v144 = vunpack.c.l.b16 %v142
      %v145 = vunpack.c.h.b16 %v142
      %v146 = vpack.c.b16 %v144, %v144
      %v147 = vpack.c.b16 %v145, %v145
      %vm150 = vcmask 60416
      %151 = vst.msk [vmem:[%s3] sm:$0xf] %vm150, %v146
      %152 = vst.msk [vmem:[%s3 + $0x4] sm:$0xf] %vm150, %v147
      %v153 = vld [vmem:[#allocation2] sm:$0xff]
      %v154 = vld [vmem:[#allocation2 + $0x8] sm:$0xff]
      %v155 = vld [vmem:[%s2] sm:$0x1]
      %v157 = vlaneseq
      %v158 = vshrl.u32 %v157, 7
      %v159 = vsub.s32 0, %v158
      %v160 = vrot.slane %v155, %v159
      %v162 = vadd.f32 %v153, %v160
      %v163 = vadd.f32 %v154, %v160
      %v164 = vpack.c.bf16 %v163, %v162
      %v166 = vunpack.c.l.b16 %v164
      %v167 = vunpack.c.h.b16 %v164
      %v168 = vpack.c.b16 %v166, %v166
      %v169 = vpack.c.b16 %v167, %v167
      %170 = vrot.lane.b32.xlu0 %v168, 120
      %v171 = vpop.permute.xlu0 %170
      %172 = vrot.lane.b32.xlu0 %v169, 120
      %v173 = vpop.permute.xlu0 %172
      %s176 = scalar_lea.vmem %s3, 8
      %177 = vst.msk [vmem:[%s176] sm:$0xf] %vm150, %v171
      %178 = vst.msk [vmem:[%s176 + $0x4] sm:$0xf] %vm150, %v173
      %v179 = vld [vmem:[#allocation2] sm:$0xff]
      %v180 = vld [vmem:[#allocation2 + $0x8] sm:$0xff]
      %v181 = vld [vmem:[%s2] sm:$0x1]
      %v183 = vlaneseq
      %v184 = vshrl.u32 %v183, 7
      %v185 = vsub.s32 0, %v184
      %v186 = vrot.slane %v181, %v185
      %v188 = vadd.f32 %v179, %v186
      %v189 = vadd.f32 %v180, %v186
      %v190 = vpack.c.bf16 %v189, %v188
      %v192 = vunpack.c.l.b16 %v190
      %v193 = vunpack.c.h.b16 %v190
      %v194 = vpack.c.b16 %v192, %v192
      %v195 = vpack.c.b16 %v193, %v193
      %196 = vrot.lane.b32.xlu0 %v194, 112
      %v197 = vpop.permute.xlu0 %196
      %198 = vrot.lane.b32.xlu0 %v195, 112
      %v199 = vpop.permute.xlu0 %198
      %s202 = scalar_lea.vmem %s3, 16
      %203 = vst.msk [vmem:[%s202] sm:$0xf] %vm150, %v197
      %204 = vst.msk [vmem:[%s202 + $0x4] sm:$0xf] %vm150, %v199
      %v205 = vld [vmem:[#allocation2] sm:$0xff]
      %v206 = vld [vmem:[#allocation2 + $0x8] sm:$0xff]
      %v207 = vld [vmem:[%s2] sm:$0x1]
      %v209 = vlaneseq
      %v210 = vshrl.u32 %v209, 7
      %v211 = vsub.s32 0, %v210
      %v212 = vrot.slane %v207, %v211
      %v214 = vadd.f32 %v205, %v212
      %v215 = vadd.f32 %v206, %v212
      %v216 = vpack.c.bf16 %v215, %v214
      %v218 = vunpack.c.l.b16 %v216
      %v219 = vunpack.c.h.b16 %v216
      %v220 = vpack.c.b16 %v218, %v218
      %v221 = vpack.c.b16 %v219, %v219
      %222 = vrot.lane.b32.xlu0 %v220, 104
      %v223 = vpop.permute.xlu0 %222
      %224 = vrot.lane.b32.xlu0 %v221, 104
      %v225 = vpop.permute.xlu0 %224
      %s228 = scalar_lea.vmem %s3, 24
      %229 = vst.msk [vmem:[%s228] sm:$0xf] %vm150, %v223
      %230 = vst.msk [vmem:[%s228 + $0x4] sm:$0xf] %vm150, %v225
      %v231 = vld [vmem:[#allocation2] sm:$0xff]
      %v232 = vld [vmem:[#allocation2 + $0x8] sm:$0xff]
      %v233 = vld [vmem:[%s2] sm:$0x1]
      %v235 = vlaneseq
      %v236 = vshrl.u32 %v235, 7
      %v237 = vsub.s32 0, %v236
      %v238 = vrot.slane %v233, %v237
      %v240 = vadd.f32 %v231, %v238
      %v241 = vadd.f32 %v232, %v238
      %v242 = vpack.c.bf16 %v241, %v240
      %v244 = vunpack.c.l.b16 %v242
      %v245 = vunpack.c.h.b16 %v242
      %v246 = vpack.c.b16 %v244, %v244
      %v247 = vpack.c.b16 %v245, %v245
      %248 = vrot.lane.b32.xlu0 %v246, 96
      %v249 = vpop.permute.xlu0 %248
      %250 = vrot.lane.b32.xlu0 %v247, 96
      %v251 = vpop.permute.xlu0 %250
      %254 = vst.msk [vmem:[%s4] sm:$0xf] %vm150, %v249
      %255 = vst.msk [vmem:[%s4 + $0x4] sm:$0xf] %vm150, %v251
      %v256 = vld [vmem:[#allocation2] sm:$0xff]
      %v257 = vld [vmem:[#allocation2 + $0x8] sm:$0xff]
      %v258 = vld [vmem:[%s2] sm:$0x1]
      %v260 = vlaneseq
      %v261 = vshrl.u32 %v260, 7
      %v262 = vsub.s32 0, %v261
      %v263 = vrot.slane %v258, %v262
      %v265 = vadd.f32 %v256, %v263
      %v266 = vadd.f32 %v257, %v263
      %v267 = vpack.c.bf16 %v266, %v265
      %v269 = vunpack.c.l.b16 %v267
      %v270 = vunpack.c.h.b16 %v267
      %v271 = vpack.c.b16 %v269, %v269
      %v272 = vpack.c.b16 %v270, %v270
      %273 = vrot.lane.b32.xlu0 %v271, 88
      %v274 = vpop.permute.xlu0 %273
      %275 = vrot.lane.b32.xlu0 %v272, 88
      %v276 = vpop.permute.xlu0 %275
      %s279 = scalar_lea.vmem %s4, 8
      %280 = vst.msk [vmem:[%s279] sm:$0xf] %vm150, %v274
      %281 = vst.msk [vmem:[%s279 + $0x4] sm:$0xf] %vm150, %v276
      %v282 = vld [vmem:[#allocation2] sm:$0xff]
      %v283 = vld [vmem:[#allocation2 + $0x8] sm:$0xff]
      %v284 = vld [vmem:[%s2] sm:$0x1]
      %v286 = vlaneseq
      %v287 = vshrl.u32 %v286, 7
      %v288 = vsub.s32 0, %v287
      %v289 = vrot.slane %v284, %v288
      %v291 = vadd.f32 %v282, %v289
      %v292 = vadd.f32 %v283, %v289
      %v293 = vpack.c.bf16 %v292, %v291
      %v295 = vunpack.c.l.b16 %v293
      %v296 = vunpack.c.h.b16 %v293
      %v297 = vpack.c.b16 %v295, %v295
      %v298 = vpack.c.b16 %v296, %v296
      %299 = vrot.lane.b32.xlu0 %v297, 80
      %v300 = vpop.permute.xlu0 %299
      %301 = vrot.lane.b32.xlu0 %v298, 80
      %v302 = vpop.permute.xlu0 %301
      %s305 = scalar_lea.vmem %s4, 16
      %306 = vst.msk [vmem:[%s305] sm:$0xf] %vm150, %v300
      %307 = vst.msk [vmem:[%s305 + $0x4] sm:$0xf] %vm150, %v302
      %v308 = vld [vmem:[#allocation2] sm:$0xff]
      %v309 = vld [vmem:[#allocation2 + $0x8] sm:$0xff]
      %v310 = vld [vmem:[%s2] sm:$0x1]
      %v312 = vlaneseq
      %v313 = vshrl.u32 %v312, 7
      %v314 = vsub.s32 0, %v313
      %v315 = vrot.slane %v310, %v314
      %v317 = vadd.f32 %v308, %v315
      %v318 = vadd.f32 %v309, %v315
      %v319 = vpack.c.bf16 %v318, %v317
      %v321 = vunpack.c.l.b16 %v319
      %v322 = vunpack.c.h.b16 %v319
      %v323 = vpack.c.b16 %v321, %v321
      %v324 = vpack.c.b16 %v322, %v322
      %325 = vrot.lane.b32.xlu0 %v323, 72
      %v326 = vpop.permute.xlu0 %325
      %327 = vrot.lane.b32.xlu0 %v324, 72
      %v328 = vpop.permute.xlu0 %327
      %s331 = scalar_lea.vmem %s4, 24
      %332 = vst.msk [vmem:[%s331] sm:$0xf] %vm150, %v326
      %333 = vst.msk [vmem:[%s331 + $0x4] sm:$0xf] %vm150, %v328
      %v334 = vld [vmem:[#allocation2] sm:$0xff]
      %v335 = vld [vmem:[#allocation2 + $0x8] sm:$0xff]
      %v336 = vld [vmem:[%s2] sm:$0x1]
      %v338 = vlaneseq
      %v339 = vshrl.u32 %v338, 7
      %v340 = vsub.s32 0, %v339
      %v341 = vrot.slane %v336, %v340
      %v343 = vadd.f32 %v334, %v341
      %v344 = vadd.f32 %v335, %v341
      %v345 = vpack.c.bf16 %v344, %v343
      %v347 = vunpack.c.l.b16 %v345
      %v348 = vunpack.c.h.b16 %v345
      %v349 = vpack.c.b16 %v347, %v347
      %v350 = vpack.c.b16 %v348, %v348
      %351 = vrot.lane.b32.xlu0 %v349, 64
      %v352 = vpop.permute.xlu0 %351
      %353 = vrot.lane.b32.xlu0 %v350, 64
      %v354 = vpop.permute.xlu0 %353
      %357 = vst.msk [vmem:[%s5] sm:$0xf] %vm150, %v352
      %358 = vst.msk [vmem:[%s5 + $0x4] sm:$0xf] %vm150, %v354
      %v359 = vld [vmem:[#allocation2] sm:$0xff]
      %v360 = vld [vmem:[#allocation2 + $0x8] sm:$0xff]
      %v361 = vld [vmem:[%s2] sm:$0x1]
      %v363 = vlaneseq
      %v364 = vshrl.u32 %v363, 7
      %v365 = vsub.s32 0, %v364
      %v366 = vrot.slane %v361, %v365
      %v368 = vadd.f32 %v359, %v366
      %v369 = vadd.f32 %v360, %v366
      %v370 = vpack.c.bf16 %v369, %v368
      %v372 = vunpack.c.l.b16 %v370
      %v373 = vunpack.c.h.b16 %v370
      %v374 = vpack.c.b16 %v372, %v372
      %v375 = vpack.c.b16 %v373, %v373
      %376 = vrot.lane.b32.xlu0 %v374, 56
      %v377 = vpop.permute.xlu0 %376
      %378 = vrot.lane.b32.xlu0 %v375, 56
      %v379 = vpop.permute.xlu0 %378
      %s382 = scalar_lea.vmem %s5, 8
      %383 = vst.msk [vmem:[%s382] sm:$0xf] %vm150, %v377
      %384 = vst.msk [vmem:[%s382 + $0x4] sm:$0xf] %vm150, %v379
      %v385 = vld [vmem:[#allocation2] sm:$0xff]
      %v386 = vld [vmem:[#allocation2 + $0x8] sm:$0xff]
      %v387 = vld [vmem:[%s2] sm:$0x1]
      %v389 = vlaneseq
      %v390 = vshrl.u32 %v389, 7
      %v391 = vsub.s32 0, %v390
      %v392 = vrot.slane %v387, %v391
      %v394 = vadd.f32 %v385, %v392
      %v395 = vadd.f32 %v386, %v392
      %v396 = vpack.c.bf16 %v395, %v394
      %v398 = vunpack.c.l.b16 %v396
      %v399 = vunpack.c.h.b16 %v396
      %v400 = vpack.c.b16 %v398, %v398
      %v401 = vpack.c.b16 %v399, %v399
      %402 = vrot.lane.b32.xlu0 %v400, 48
      %v403 = vpop.permute.xlu0 %402
      %404 = vrot.lane.b32.xlu0 %v401, 48
      %v405 = vpop.permute.xlu0 %404
      %s408 = scalar_lea.vmem %s5, 16
      %409 = vst.msk [vmem:[%s408] sm:$0xf] %vm150, %v403
      %410 = vst.msk [vmem:[%s408 + $0x4] sm:$0xf] %vm150, %v405
      %v411 = vld [vmem:[#allocation2] sm:$0xff]
      %v412 = vld [vmem:[#allocation2 + $0x8] sm:$0xff]
      %v413 = vld [vmem:[%s2] sm:$0x1]
      %v415 = vlaneseq
      %v416 = vshrl.u32 %v415, 7
      %v417 = vsub.s32 0, %v416
      %v418 = vrot.slane %v413, %v417
      %v420 = vadd.f32 %v411, %v418
      %v421 = vadd.f32 %v412, %v418
      %v422 = vpack.c.bf16 %v421, %v420
      %v424 = vunpack.c.l.b16 %v422
      %v425 = vunpack.c.h.b16 %v422
      %v426 = vpack.c.b16 %v424, %v424
      %v427 = vpack.c.b16 %v425, %v425
      %428 = vrot.lane.b32.xlu0 %v426, 40
      %v429 = vpop.permute.xlu0 %428
      %430 = vrot.lane.b32.xlu0 %v427, 40
      %v431 = vpop.permute.xlu0 %430
      %s434 = scalar_lea.vmem %s5, 24
      %435 = vst.msk [vmem:[%s434] sm:$0xf] %vm150, %v429
      %436 = vst.msk [vmem:[%s434 + $0x4] sm:$0xf] %vm150, %v431
    $region29: #{tpu_custom_call.1} parent=1 // pred_fallthru
      _
    // Predicated region
    $region30: #{tpu_custom_call.1} parent=1 // pred_check
      _
    $region31: #{tpu_custom_call.1} parent=1 // pred_check_branch
      %438 = sbr.rel (0) target = $region33
    $region32: #{tpu_custom_call.1} parent=1 // pred_region
      _
    $region33: #{tpu_custom_call.1} parent=1 // pred_fallthru
      _
    // Predicated region
    $region34: #{tpu_custom_call.1} parent=1 // pred_check
      _
    $region35: #{tpu_custom_call.1} parent=1 // pred_check_branch
      %440 = sbr.rel (0) target = $region37
    $region36: #{tpu_custom_call.1} parent=1 // pred_region
      _
    $region37: #{tpu_custom_call.1} parent=1 // pred_fallthru
      _
    // Predicated region
    $region38: #{tpu_custom_call.1} parent=1 // pred_check
      _
    $region39: #{tpu_custom_call.1} parent=1 // pred_check_branch
      %442 = sbr.rel (0) target = $region41
    $region40: #{tpu_custom_call.1} parent=1 // pred_region
      _
    $region41: #{tpu_custom_call.1} parent=1 // pred_fallthru
      _
    // Predicated region
    $region42: #{tpu_custom_call.1} parent=1 // pred_check
      _
    $region43: #{tpu_custom_call.1} parent=1 // pred_check_branch
      %444 = sbr.rel (0) target = $region45
    $region44: #{tpu_custom_call.1} parent=1 // pred_region
      _
    $region45: #{tpu_custom_call.1} parent=1 // pred_fallthru
      _
    // Predicated region
    $region46: #{tpu_custom_call.1} parent=1 // pred_check
      _
    $region47: #{tpu_custom_call.1} parent=1 // pred_check_branch
      %446 = sbr.rel (0) target = $region49
    $region48: #{tpu_custom_call.1} parent=1 // pred_region
      _
    $region49: #{tpu_custom_call.1} parent=1 // pred_fallthru
      _
    // Predicated region
    $region50: #{tpu_custom_call.1} parent=1 // pred_check
      _
    $region51: #{tpu_custom_call.1} parent=1 // pred_check_branch
      %448 = sbr.rel (0) target = $region53
    $region52: #{tpu_custom_call.1} parent=1 // pred_region
      _
    $region53: #{tpu_custom_call.1} parent=1 // pred_fallthru
      _
    %449 = vsyncpa [#allocation4], 1
    %450 = vsyncpa [#allocation6], 1

</llo_original>
